<compile_context>
chip_gen: v7x
topology: tpu7x:2x2x1
jax: 0.10.0
libtpu: 0.0.40
codegen_flags: <defaults>
</compile_context>

<pallas_src>
import jax
import jax.numpy as jnp
from jax.experimental import pallas as pl
from jax.experimental.pallas import tpu as pltpu


def conv1x1_pad_kernel(x_ref, w_ref, b_ref, o_ref):
    # x_ref: (Cin, H, W)        VMEM  -- one batch element, unpadded
    # w_ref: (Cin, Cout, 1, 1)  VMEM  -- weight columns, broadcast-ready
    # b_ref: (Cout, 1, 1)       VMEM  -- bias, broadcast-ready
    # o_ref: (Cout, Hp, Wp)     VMEM  -- padded conv output (Hp=H+2, Wp=W+2)
    cin, h, w = x_ref.shape
    cout, hp, wp = o_ref.shape

    b = b_ref[...]                                     # (Cout, 1, 1)

    # Vectorized-over-Cout contraction: Cin unrolled broadcast-FMAs on the VPU
    # (no MXU feed/drain for a K=3 / Cout=8 contraction).
    acc = b + w_ref[0] * x_ref[0]                      # (Cout, H, W)
    for ci in range(1, cin):
        acc = acc + w_ref[ci] * x_ref[ci]

    # padding=1 with zero-padded input: border pixels evaluate to the bias.
    o_ref[...] = jnp.broadcast_to(b, (cout, hp, wp)).astype(o_ref.dtype)
    # Interior pixels get the conv result (single block store).
    o_ref[:, 1:1 + h, 1:1 + w] = acc.astype(o_ref.dtype)


def model_forward(x_nchw, weight, bias):
    """Conv2d(3, 8, kernel_size=1, stride=1, padding=1) forward via Pallas.

    x_nchw:  (N, 3, H, W) float32
    weight:  (8, 3, 1, 1) float32
    bias:    (8,)         float32
    returns: (N, 8, H+2, W+2) float32  (same as PyTorch with padding=1)
    """
    N, Cin, H, W = x_nchw.shape
    Cout = weight.shape[0]
    pad = 1
    Hp, Wp = H + 2 * pad, W + 2 * pad

    # Tiny parameter reshapes (O(30) elements); no HBM pass over activations.
    w_k = jnp.transpose(weight.astype(jnp.float32), (1, 0, 2, 3))  # (Cin,Cout,1,1)
    b_k = bias.astype(jnp.float32).reshape(Cout, 1, 1)             # (Cout,1,1)

    flops = 2 * N * Cout * Cin * H * W
    bytes_accessed = 4 * (N * Cin * H * W + N * Cout * Hp * Wp
                          + Cin * Cout + Cout)

    out = pl.pallas_call(
        conv1x1_pad_kernel,
        out_shape=jax.ShapeDtypeStruct((N, Cout, Hp, Wp), x_nchw.dtype),
        grid=(N,),
        in_specs=[
            # Unpadded activation slab for one batch element (last two dims are
            # full-extent, so the (8,128) block constraint is satisfied).
            pl.BlockSpec((None, Cin, H, W), lambda n: (n, 0, 0, 0)),
            # Whole weight / bias tables in VMEM (vector reads, broadcast-ready).
            pl.BlockSpec((Cin, Cout, 1, 1), lambda n: (0, 0, 0, 0)),
            pl.BlockSpec((Cout, 1, 1), lambda n: (0, 0, 0)),
        ],
        out_specs=pl.BlockSpec((None, Cout, Hp, Wp), lambda n: (n, 0, 0, 0)),
        compiler_params=pltpu.CompilerParams(
            dimension_semantics=("parallel",),
        ),
        cost_estimate=pl.CostEstimate(
            flops=flops, transcendentals=0, bytes_accessed=bytes_accessed
        ),
    )(x_nchw, w_k, b_k)

    return out


if __name__ == "__main__":
    key = jax.random.PRNGKey(0)
    kx, kw, kb = jax.random.split(key, 3)

    # Small shapes consistent with the module: Conv2d(3 -> 8, 1x1, pad=1).
    N, Cin, H, W, Cout = 2, 3, 16, 16, 8
    x = jax.random.normal(kx, (N, Cin, H, W), dtype=jnp.float32)

    # Deterministic parameter init (mimics PyTorch's uniform fan-in bound).
    bound = 1.0 / (Cin ** 0.5)
    weight = jax.random.uniform(kw, (Cout, Cin, 1, 1), jnp.float32, -bound, bound)
    bias = jax.random.uniform(kb, (Cout,), jnp.float32, -bound, bound)

    out = model_forward(x, weight, bias)
    out = jax.block_until_ready(out)

    # Reference: plain-JAX 1x1 conv with padding=1, computed in NCHW.
    x_pad_ref = jnp.pad(x, ((0, 0), (0, 0), (1, 1), (1, 1)))
    ref = jnp.einsum("nchw,oc->nohw", x_pad_ref, weight.reshape(Cout, Cin)) \
          + bias.reshape(1, Cout, 1, 1)

    assert out.shape == (N, Cout, H + 2, W + 2), out.shape
    assert jnp.allclose(out, ref, atol=1e-5, rtol=1e-5)

    print("KERNEL_OK")
</pallas_src>

<mosaic_0001>
module attributes {stable_mosaic.version = 11 : i64} {
  func.func @conv1x1_pad_kernel(%arg0: i32, %arg1: memref<1x3x16x16xf32, #tpu.memory_space<vmem>>, %arg2: memref<3x8x1x1xf32, #tpu.memory_space<vmem>>, %arg3: memref<8x1x1xf32, #tpu.memory_space<vmem>>, %arg4: memref<1x8x18x18xf32, #tpu.memory_space<vmem>>) attributes {dimension_semantics = [#tpu.dimension_semantics<parallel>], iteration_bounds = array<i64: 2>, scalar_prefetch = 0 : i64, scratch_operands = 0 : i64, tpu.core_type = #tpu.core_type<tc>, window_params = [{transform_indices = @transform_0, window_bounds = array<i64: 1, 3, 16, 16>}, {pipeline_mode = #tpu.pipeline_mode<synchronous>, transform_indices = @transform_1, window_bounds = array<i64: 3, 8, 1, 1>}, {pipeline_mode = #tpu.pipeline_mode<synchronous>, transform_indices = @transform_2, window_bounds = array<i64: 8, 1, 1>}, {transform_indices = @transform_3, window_bounds = array<i64: 1, 8, 18, 18>}]} {
    %c0 = arith.constant 0 : index
    %c0_0 = arith.constant 0 : index
    %c0_1 = arith.constant 0 : index
    %0 = vector.load %arg3[%c0, %c0_0, %c0_1] : memref<8x1x1xf32, #tpu.memory_space<vmem>>, vector<8x1x1xf32>
    %c0_2 = arith.constant 0 : index
    %c0_3 = arith.constant 0 : index
    %c0_4 = arith.constant 0 : index
    %c0_5 = arith.constant 0 : index
    %1 = vector.load %arg2[%c0_2, %c0_3, %c0_4, %c0_5] : memref<3x8x1x1xf32, #tpu.memory_space<vmem>>, vector<1x8x1x1xf32>
    %2 = vector.shape_cast %1 : vector<1x8x1x1xf32> to vector<8x1x1xf32>
    %c0_6 = arith.constant 0 : index
    %c0_7 = arith.constant 0 : index
    %c0_8 = arith.constant 0 : index
    %c0_9 = arith.constant 0 : index
    %3 = vector.load %arg1[%c0_6, %c0_7, %c0_8, %c0_9] : memref<1x3x16x16xf32, #tpu.memory_space<vmem>>, vector<1x1x16x16xf32>
    %4 = vector.shape_cast %3 : vector<1x1x16x16xf32> to vector<16x16xf32>
    %5 = vector.shape_cast %4 : vector<16x16xf32> to vector<1x16x16xf32>
    %6 = vector.broadcast %2 : vector<8x1x1xf32> to vector<8x16x16xf32>
    %7 = vector.broadcast %5 : vector<1x16x16xf32> to vector<8x16x16xf32>
    %8 = arith.mulf %6, %7 : vector<8x16x16xf32>
    %9 = vector.broadcast %0 : vector<8x1x1xf32> to vector<8x16x16xf32>
    %10 = arith.addf %9, %8 : vector<8x16x16xf32>
    %c1 = arith.constant 1 : index
    %c0_10 = arith.constant 0 : index
    %c0_11 = arith.constant 0 : index
    %c0_12 = arith.constant 0 : index
    %11 = vector.load %arg2[%c1, %c0_10, %c0_11, %c0_12] : memref<3x8x1x1xf32, #tpu.memory_space<vmem>>, vector<1x8x1x1xf32>
    %12 = vector.shape_cast %11 : vector<1x8x1x1xf32> to vector<8x1x1xf32>
    %c0_13 = arith.constant 0 : index
    %c1_14 = arith.constant 1 : index
    %c0_15 = arith.constant 0 : index
    %c0_16 = arith.constant 0 : index
    %13 = vector.load %arg1[%c0_13, %c1_14, %c0_15, %c0_16] : memref<1x3x16x16xf32, #tpu.memory_space<vmem>>, vector<1x1x16x16xf32>
    %14 = vector.shape_cast %13 : vector<1x1x16x16xf32> to vector<16x16xf32>
    %15 = vector.shape_cast %14 : vector<16x16xf32> to vector<1x16x16xf32>
    %16 = vector.broadcast %12 : vector<8x1x1xf32> to vector<8x16x16xf32>
    %17 = vector.broadcast %15 : vector<1x16x16xf32> to vector<8x16x16xf32>
    %18 = arith.mulf %16, %17 : vector<8x16x16xf32>
    %19 = arith.addf %10, %18 : vector<8x16x16xf32>
    %c2 = arith.constant 2 : index
    %c0_17 = arith.constant 0 : index
    %c0_18 = arith.constant 0 : index
    %c0_19 = arith.constant 0 : index
    %20 = vector.load %arg2[%c2, %c0_17, %c0_18, %c0_19] : memref<3x8x1x1xf32, #tpu.memory_space<vmem>>, vector<1x8x1x1xf32>
    %21 = vector.shape_cast %20 : vector<1x8x1x1xf32> to vector<8x1x1xf32>
    %c0_20 = arith.constant 0 : index
    %c2_21 = arith.constant 2 : index
    %c0_22 = arith.constant 0 : index
    %c0_23 = arith.constant 0 : index
    %22 = vector.load %arg1[%c0_20, %c2_21, %c0_22, %c0_23] : memref<1x3x16x16xf32, #tpu.memory_space<vmem>>, vector<1x1x16x16xf32>
    %23 = vector.shape_cast %22 : vector<1x1x16x16xf32> to vector<16x16xf32>
    %24 = vector.shape_cast %23 : vector<16x16xf32> to vector<1x16x16xf32>
    %25 = vector.broadcast %21 : vector<8x1x1xf32> to vector<8x16x16xf32>
    %26 = vector.broadcast %24 : vector<1x16x16xf32> to vector<8x16x16xf32>
    %27 = arith.mulf %25, %26 : vector<8x16x16xf32>
    %28 = arith.addf %19, %27 : vector<8x16x16xf32>
    %29 = vector.shape_cast %0 : vector<8x1x1xf32> to vector<8x1x1xf32>
    %30 = vector.broadcast %29 : vector<8x1x1xf32> to vector<8x18x18xf32>
    %c0_24 = arith.constant 0 : index
    %c0_25 = arith.constant 0 : index
    %c0_26 = arith.constant 0 : index
    %c0_27 = arith.constant 0 : index
    %31 = vector.load %arg4[%c0_24, %c0_25, %c0_26, %c0_27] : memref<1x8x18x18xf32, #tpu.memory_space<vmem>>, vector<1x8x18x18xf32>
    %32 = vector.shape_cast %31 : vector<1x8x18x18xf32> to vector<8x18x18xf32>
    %33 = vector.shape_cast %30 : vector<8x18x18xf32> to vector<1x8x18x18xf32>
    tpu.vector_store %arg4[%c0_24, %c0_25, %c0_26, %c0_27], %33 {strides = array<i32>} : memref<1x8x18x18xf32, #tpu.memory_space<vmem>>, vector<1x8x18x18xf32>,
    %c0_28 = arith.constant 0 : index
    %c0_29 = arith.constant 0 : index
    %c1_30 = arith.constant 1 : index
    %c1_31 = arith.constant 1 : index
    %34 = vector.load %arg4[%c0_28, %c0_29, %c1_30, %c1_31] : memref<1x8x18x18xf32, #tpu.memory_space<vmem>>, vector<1x8x16x16xf32>
    %35 = vector.shape_cast %34 : vector<1x8x16x16xf32> to vector<8x16x16xf32>
    %36 = vector.shape_cast %28 : vector<8x16x16xf32> to vector<1x8x16x16xf32>
    tpu.vector_store %arg4[%c0_28, %c0_29, %c1_30, %c1_31], %36 {strides = array<i32>} : memref<1x8x18x18xf32, #tpu.memory_space<vmem>>, vector<1x8x16x16xf32>,
    return
  }
  func.func @transform_0(%arg0: i32) -> (i32, i32, i32, i32) {
    %c0_i32 = arith.constant 0 : i32
    %c0_i32_0 = arith.constant 0 : i32
    %c0_i32_1 = arith.constant 0 : i32
    %c0_i32_2 = arith.constant 0 : i32
    return %arg0, %c0_i32, %c0_i32_0, %c0_i32_1 : i32, i32, i32, i32
  }
  func.func @transform_1(%arg0: i32) -> (i32, i32, i32, i32) {
    %c0_i32 = arith.constant 0 : i32
    %c0_i32_0 = arith.constant 0 : i32
    %c0_i32_1 = arith.constant 0 : i32
    %c0_i32_2 = arith.constant 0 : i32
    %c0_i32_3 = arith.constant 0 : i32
    return %c0_i32, %c0_i32_0, %c0_i32_1, %c0_i32_2 : i32, i32, i32, i32
  }
  func.func @transform_2(%arg0: i32) -> (i32, i32, i32) {
    %c0_i32 = arith.constant 0 : i32
    %c0_i32_0 = arith.constant 0 : i32
    %c0_i32_1 = arith.constant 0 : i32
    %c0_i32_2 = arith.constant 0 : i32
    return %c0_i32, %c0_i32_0, %c0_i32_1 : i32, i32, i32
  }
  func.func @transform_3(%arg0: i32) -> (i32, i32, i32, i32) {
    %c0_i32 = arith.constant 0 : i32
    %c0_i32_0 = arith.constant 0 : i32
    %c0_i32_1 = arith.constant 0 : i32
    %c0_i32_2 = arith.constant 0 : i32
    return %arg0, %c0_i32, %c0_i32_0, %c0_i32_1 : i32, i32, i32, i32
  }
}

</mosaic_0001>

<llo_original>
// kernel: tpu_custom_call.1
$region0: #{tpu_custom_call.1}
  #allocation0 [shape = 'u32[]', space=smem, size = 0x4, offset = 0x4, fixed_abs, tag = 'smem constant byte address 0x4 - core index']
  #allocation1 [shape = 'u32[144,128]{1,0:T(1,128)}', space=vmem, size = 0x12000, scoped, tag = 'internal scratch']
  %s0 = inlined_call_operand.hbm [shape: f32[2,3,16,16], index: 0, kind: input, shape index: {}]
  %s1 = inlined_call_operand.vmem [shape: f32[3,8,1,1], index: 1, kind: input, shape index: {}]
  %s2 = inlined_call_operand.vmem [shape: f32[8,1,1], index: 2, kind: input, shape index: {}]
  %s3 = inlined_call_operand.vmem [shape: f32[2,8,18,18], index: 3, kind: output, shape index: {}]
  %s4 = sld [smem:[#allocation0]]
  $region49: #{tpu_custom_call.1} parent=0
    _
  %s6 = ssub.s32 1, %s4
  %s7 = scalar_select 0, %s6, %s4
  $region1: #{tpu_custom_call.1} parent=0
    #allocation2 [shape = 'u8[49152]{0}', space=vmem, size = 0xc000, scoped, tag = 'input window, operand 0']
    #allocation3 [shape = 's32[2]{0}', space=sflag, size = 0x8, scoped, tag = 'scoped memory for tpu_custom_call.1']
    %8 = vsyncpa [#allocation3], 0
    %s9 = scalar_lea.sflag [#allocation3], 1
    %10 = vsyncpa %s9, 0
    loop: start=0, step=1, limit=4
    $region2: #{tpu_custom_call.1} parent=1 // loop_pre_header
      _
    $region3: #{tpu_custom_call.1} parent=1 // loop_header
      %s12 = sphi 0, %s16
      %p13 = scmp.ge.s32.totalorder %s12, 4
      %s22 = sphi 0, %s24
      %s25 = sphi 0, %s22
      %s26 = sphi 0, %s25
      %s42 = sphi 0, %s26
      %s46 = sphi 0, %s46
      %s48 = sphi 0, %s46
      %s49 = sphi 0, %s48
      %s63 = sphi 0, %s49
      %s67 = sphi 0, %s67
      %s69 = sphi 0, %s67
      %s70 = sphi 0, %s69
      %s84 = sphi 0, %s70
      %s90 = sphi 0, %s92
      %s93 = sphi 0, %s90
      %s94 = sphi 0, %s93
      %s110 = sphi 0, %s94
    $region4: #{tpu_custom_call.1} parent=1 // loop_header_branch
      %15 = sbr.rel (%p13) target = $region8
    $region5: #{tpu_custom_call.1} parent=1 // loop_body
      %s17 = ssub.s32 %s12, 1
      %s18 = ssub.s32 %s12, 2
      %s19 = sadd.s32 %s12, 1
      %s20 = ssub.s32 %s12, %s19
      %p21 = scmp.eq.s32.totalorder %s20, 0
      %s23 = sadd.s32 %s22, 1
      %s24 = scalar_select %p21, %s22, %s23
      %p27 = pneg %p21
      %p28 = scmp.eq.s32.totalorder %s12, 1
      %p29 = por %p27, %p28
      %p30 = scmp.ne.s32.totalorder %s22, %s25
      %p31 = scmp.eq.s32.totalorder %s12, 0
      %p32 = por %p30, %p31
      %p33 = scmp.ne.s32.totalorder %s22, %s25
      %p34 = scmp.eq.s32.totalorder %s17, 1
      %p35 = por %p33, %p34
      %p36 = scmp.ne.s32.totalorder %s25, %s26
      %p37 = scmp.eq.s32.totalorder %s17, 0
      %p38 = por %p36, %p37
      %p39 = scmp.ne.s32.totalorder %s25, %s26
      %p40 = scmp.eq.s32.totalorder %s18, 1
      %p41 = por %p39, %p40
      %p43 = scmp.ne.s32.totalorder %s26, %s42
      %p44 = scmp.eq.s32.totalorder %s18, 0
      %p45 = por %p43, %p44
      %s47 = sadd.s32 %s46, 1
      %p50 = scmp.eq.s32.totalorder %s12, 1
      %p51 = scmp.ne.s32.totalorder %s46, %s48
      %p52 = scmp.eq.s32.totalorder %s12, 0
      %p53 = por %p51, %p52
      %p54 = scmp.ne.s32.totalorder %s46, %s48
      %p55 = scmp.eq.s32.totalorder %s17, 1
      %p56 = por %p54, %p55
      %p57 = scmp.ne.s32.totalorder %s48, %s49
      %p58 = scmp.eq.s32.totalorder %s17, 0
      %p59 = por %p57, %p58
      %p60 = scmp.ne.s32.totalorder %s48, %s49
      %p61 = scmp.eq.s32.totalorder %s18, 1
      %p62 = por %p60, %p61
      %p64 = scmp.ne.s32.totalorder %s49, %s63
      %p65 = scmp.eq.s32.totalorder %s18, 0
      %p66 = por %p64, %p65
      %s68 = sadd.s32 %s67, 1
      %p71 = scmp.eq.s32.totalorder %s12, 1
      %p72 = scmp.ne.s32.totalorder %s67, %s69
      %p73 = scmp.eq.s32.totalorder %s12, 0
      %p74 = por %p72, %p73
      %p75 = scmp.ne.s32.totalorder %s67, %s69
      %p76 = scmp.eq.s32.totalorder %s17, 1
      %p77 = por %p75, %p76
      %p78 = scmp.ne.s32.totalorder %s69, %s70
      %p79 = scmp.eq.s32.totalorder %s17, 0
      %p80 = por %p78, %p79
      %p81 = scmp.ne.s32.totalorder %s69, %s70
      %p82 = scmp.eq.s32.totalorder %s18, 1
      %p83 = por %p81, %p82
      %p85 = scmp.ne.s32.totalorder %s70, %s84
      %p86 = scmp.eq.s32.totalorder %s18, 0
      %p87 = por %p85, %p86
      %s88 = ssub.s32 %s12, %s19
      %p89 = scmp.eq.s32.totalorder %s88, 0
      %s91 = sadd.s32 %s90, 1
      %s92 = scalar_select %p89, %s90, %s91
      %p95 = pneg %p89
      %p96 = scmp.eq.s32.totalorder %s12, 1
      %p97 = por %p95, %p96
      %p98 = scmp.ne.s32.totalorder %s90, %s93
      %p99 = scmp.eq.s32.totalorder %s12, 0
      %p100 = por %p98, %p99
      %p101 = scmp.ne.s32.totalorder %s90, %s93
      %p102 = scmp.eq.s32.totalorder %s17, 1
      %p103 = por %p101, %p102
      %p104 = scmp.ne.s32.totalorder %s93, %s94
      %p105 = scmp.eq.s32.totalorder %s17, 0
      %p106 = por %p104, %p105
      %p107 = scmp.ne.s32.totalorder %s93, %s94
      %p108 = scmp.eq.s32.totalorder %s18, 1
      %p109 = por %p107, %p108
      %p111 = scmp.ne.s32.totalorder %s94, %s110
      %p112 = scmp.eq.s32.totalorder %s18, 0
      %p113 = por %p111, %p112
      %p114 = scmp.le.s32.totalorder 1, %s12
      %p115 = scmp.lt.s32.totalorder %s12, 3
      %p116 = pnand %p114, %p115
      %p117 = pneg %p116
      // Predicated region
      $region9: #{tpu_custom_call.1} parent=5 // pred_check
        _
      $region10: #{tpu_custom_call.1} parent=5 // pred_check_branch
        %119 = sbr.rel (%p116) target = $region12
      $region11: #{tpu_custom_call.1} parent=5 // pred_region
        %s120 = ssub.s32 %s12, 1
        // Predicated region
        $region13: #{tpu_custom_call.1} parent=11 // pred_check
          %p121 = pneg %p59
        $region14: #{tpu_custom_call.1} parent=11 // pred_check_branch
          %123 = sbr.rel (%p121) target = $region16
        $region15: #{tpu_custom_call.1} parent=11 // pred_region
          _
        $region16: #{tpu_custom_call.1} parent=11 // pred_fallthru
          _
        // Predicated region
        $region17: #{tpu_custom_call.1} parent=11 // pred_check
          %p124 = pneg %p80
        $region18: #{tpu_custom_call.1} parent=11 // pred_check_branch
          %126 = sbr.rel (%p124) target = $region20
        $region19: #{tpu_custom_call.1} parent=11 // pred_region
          _
        $region20: #{tpu_custom_call.1} parent=11 // pred_fallthru
          _
      $region12: #{tpu_custom_call.1} parent=5 // pred_fallthru
        _
      %p127 = scmp.lt.s32.totalorder %s12, 2
      // Predicated region
      $region21: #{tpu_custom_call.1} parent=5 // pred_check
        %p128 = pneg %p127
      $region22: #{tpu_custom_call.1} parent=5 // pred_check_branch
        %130 = sbr.rel (%p128) target = $region24
      $region23: #{tpu_custom_call.1} parent=5 // pred_region
        // Predicated region
        $region25: #{tpu_custom_call.1} parent=23 // pred_check
          %p131 = pneg %p32
        $region26: #{tpu_custom_call.1} parent=23 // pred_check_branch
          %133 = sbr.rel (%p131) target = $region28
        $region27: #{tpu_custom_call.1} parent=23 // pred_region
          %s134 = sand.u32 %s22, 1
          %s135 = scalar_lea.sflag [#allocation3], %s134
          %s136 = sand.u32 %s22, 1
          %s137 = smul.addr %s136, 48
          %s138 = scalar_lea.vmem [#allocation2], %s137
          %s140 = ssub.s32 768, 768
          %141 = vsyncadd %s135, %s140
          %s142 = smul.addr %s12, 6
          %s143 = smul.addr %s142, 128
          %s144 = scalar_lea.hbm %s0, %s143
          %s145 = sshll.u32 %s138, 4
          %s146 = int_to_ptr.vmem [resolvable:$true] %s145
          %151 = dma.hbm_to_vmem [thread:$0]  %s144, 768, %s146, %s135, 128, 128, 8
        $region28: #{tpu_custom_call.1} parent=23 // pred_fallthru
          _
      $region24: #{tpu_custom_call.1} parent=5 // pred_fallthru
        _
      %p152 = scmp.le.s32.totalorder 1, %s12
      %p153 = scmp.lt.s32.totalorder %s12, 3
      %p154 = pnand %p152, %p153
      %p155 = pneg %p154
      // Predicated region
      $region29: #{tpu_custom_call.1} parent=5 // pred_check
        _
      $region30: #{tpu_custom_call.1} parent=5 // pred_check_branch
        %157 = sbr.rel (%p154) target = $region32
      $region31: #{tpu_custom_call.1} parent=5 // pred_region
        %s158 = ssub.s32 %s12, 1
        %s159 = sand.u32 %s25, 1
        %s160 = scalar_lea.sflag [#allocation3], %s159
        %s161 = sand.u32 %s25, 1
        %s162 = smul.addr %s161, 48
        %s163 = scalar_lea.vmem [#allocation2], %s162
        // Predicated region
        $region33: #{tpu_custom_call.1} parent=31 // pred_check
          %p164 = pneg %p38
        $region34: #{tpu_custom_call.1} parent=31 // pred_check_branch
          %166 = sbr.rel (%p164) target = $region36
        $region35: #{tpu_custom_call.1} parent=31 // pred_region
          %167 = dma.done %s160, 768
        $region36: #{tpu_custom_call.1} parent=31 // pred_fallthru
          _
        %s168 = sand.u32 %s25, 1
        %s169 = scalar_lea.sflag [#allocation3], %s168
        %s170 = sand.u32 %s25, 1
        %s171 = smul.addr %s170, 48
        %s172 = scalar_lea.vmem [#allocation2], %s171
        %p173 = pneg %p38
        %p174 = pneg %p35
        %p175 = pneg %p59
        %p176 = pneg %p56
        %p177 = pneg %p80
        %p178 = pneg %p77
        %p179 = pneg %p106
        %p180 = pneg %p103
        %p181 = scmp.lt.s32.totalorder %s17, 1
        %s182 = scalar_select %p181, %s17, 1
        %s183 = smul.addr %s182, 24
        %s184 = smul.addr %s183, 8
        %s185 = scalar_lea.vmem %s3, %s184
        %p186 = scmp.lt.s32.totalorder %s17, 1
        %s187 = scalar_select %p186, %s17, 1
        %s188 = smul.addr %s187, 24
        %s189 = smul.addr %s188, 8
        %s190 = scalar_lea.vmem %s3, %s189
        %v191 = vld [vmem:[%s2] sm:$0x1]
        %v192 = vld [vmem:[%s2 + $0x1] sm:$0x1]
        %v193 = vld [vmem:[%s2 + $0x2] sm:$0x1]
        %v194 = vld [vmem:[%s2 + $0x3] sm:$0x1]
        %v195 = vld [vmem:[%s2 + $0x4] sm:$0x1]
        %v196 = vld [vmem:[%s2 + $0x5] sm:$0x1]
        %v197 = vld [vmem:[%s2 + $0x6] sm:$0x1]
        %v198 = vld [vmem:[%s2 + $0x7] sm:$0x1]
        %v199 = vld [vmem:[%s1] sm:$0x1]
        %v200 = vld [vmem:[%s1 + $0x1] sm:$0x1]
        %v201 = vld [vmem:[%s1 + $0x2] sm:$0x1]
        %v202 = vld [vmem:[%s1 + $0x3] sm:$0x1]
        %v203 = vld [vmem:[%s1 + $0x4] sm:$0x1]
        %v204 = vld [vmem:[%s1 + $0x5] sm:$0x1]
        %v205 = vld [vmem:[%s1 + $0x6] sm:$0x1]
        %v206 = vld [vmem:[%s1 + $0x7] sm:$0x1]
        %v207 = vld [vmem:[%s163] sm:$0xff]
        %v208 = vld [vmem:[%s163 + $0x8] sm:$0xff]
        %v217 = vlaneseq
        %v218 = vshrl.u32 %v217, 7
        %v219 = vsub.s32 0, %v218
        %v220 = vrot.slane %v199, %v219
        %v221 = vlaneseq
        %v222 = vshrl.u32 %v221, 7
        %v223 = vsub.s32 0, %v222
        %v224 = vrot.slane %v200, %v223
        %v225 = vlaneseq
        %v226 = vshrl.u32 %v225, 7
        %v227 = vsub.s32 0, %v226
        %v228 = vrot.slane %v201, %v227
        %v229 = vlaneseq
        %v230 = vshrl.u32 %v229, 7
        %v231 = vsub.s32 0, %v230
        %v232 = vrot.slane %v202, %v231
        %v233 = vlaneseq
        %v234 = vshrl.u32 %v233, 7
        %v235 = vsub.s32 0, %v234
        %v236 = vrot.slane %v203, %v235
        %v237 = vlaneseq
        %v238 = vshrl.u32 %v237, 7
        %v239 = vsub.s32 0, %v238
        %v240 = vrot.slane %v204, %v239
        %v241 = vlaneseq
        %v242 = vshrl.u32 %v241, 7
        %v243 = vsub.s32 0, %v242
        %v244 = vrot.slane %v205, %v243
        %v245 = vlaneseq
        %v246 = vshrl.u32 %v245, 7
        %v247 = vsub.s32 0, %v246
        %v248 = vrot.slane %v206, %v247
        %249 = vset.pattern.permute.xlu0 0
        %250 = vperm.xlu0 %249, %v220
        %v251 = vpop.permute.xlu0 %250
        %253 = vset.pattern.permute.xlu0 0
        %254 = vperm.xlu0 %253, %v224
        %v255 = vpop.permute.xlu0 %254
        %257 = vset.pattern.permute.xlu0 0
        %258 = vperm.xlu0 %257, %v228
        %v259 = vpop.permute.xlu0 %258
        %261 = vset.pattern.permute.xlu0 0
        %262 = vperm.xlu0 %261, %v232
        %v263 = vpop.permute.xlu0 %262
        %265 = vset.pattern.permute.xlu0 0
        %266 = vperm.xlu0 %265, %v236
        %v267 = vpop.permute.xlu0 %266
        %269 = vset.pattern.permute.xlu0 0
        %270 = vperm.xlu0 %269, %v240
        %v271 = vpop.permute.xlu0 %270
        %273 = vset.pattern.permute.xlu0 0
        %274 = vperm.xlu0 %273, %v244
        %v275 = vpop.permute.xlu0 %274
        %277 = vset.pattern.permute.xlu0 0
        %278 = vperm.xlu0 %277, %v248
        %v279 = vpop.permute.xlu0 %278
        %v281 = vmul.f32 %v251, %v207
        %v282 = vmul.f32 %v251, %v208
        %v283 = vmul.f32 %v255, %v207
        %v284 = vmul.f32 %v255, %v208
        %v285 = vmul.f32 %v259, %v207
        %v286 = vmul.f32 %v259, %v208
        %v287 = vmul.f32 %v263, %v207
        %v288 = vmul.f32 %v263, %v208
        %v289 = vmul.f32 %v267, %v207
        %v290 = vmul.f32 %v267, %v208
        %v291 = vmul.f32 %v271, %v207
        %v292 = vmul.f32 %v271, %v208
        %v293 = vmul.f32 %v275, %v207
        %v294 = vmul.f32 %v275, %v208
        %v295 = vmul.f32 %v279, %v207
        %v296 = vmul.f32 %v279, %v208
        %v305 = vlaneseq
        %v306 = vshrl.u32 %v305, 7
        %v307 = vsub.s32 0, %v306
        %v308 = vrot.slane %v191, %v307
        %v309 = vlaneseq
        %v310 = vshrl.u32 %v309, 7
        %v311 = vsub.s32 0, %v310
        %v312 = vrot.slane %v192, %v311
        %v313 = vlaneseq
        %v314 = vshrl.u32 %v313, 7
        %v315 = vsub.s32 0, %v314
        %v316 = vrot.slane %v193, %v315
        %v317 = vlaneseq
        %v318 = vshrl.u32 %v317, 7
        %v319 = vsub.s32 0, %v318
        %v320 = vrot.slane %v194, %v319
        %v321 = vlaneseq
        %v322 = vshrl.u32 %v321, 7
        %v323 = vsub.s32 0, %v322
        %v324 = vrot.slane %v195, %v323
        %v325 = vlaneseq
        %v326 = vshrl.u32 %v325, 7
        %v327 = vsub.s32 0, %v326
        %v328 = vrot.slane %v196, %v327
        %v329 = vlaneseq
        %v330 = vshrl.u32 %v329, 7
        %v331 = vsub.s32 0, %v330
        %v332 = vrot.slane %v197, %v331
        %v333 = vlaneseq
        %v334 = vshrl.u32 %v333, 7
        %v335 = vsub.s32 0, %v334
        %v336 = vrot.slane %v198, %v335
        %337 = vset.pattern.permute.xlu0 0
        %338 = vperm.xlu0 %337, %v308
        %v339 = vpop.permute.xlu0 %338
        %341 = vset.pattern.permute.xlu0 0
        %342 = vperm.xlu0 %341, %v312
        %v343 = vpop.permute.xlu0 %342
        %345 = vset.pattern.permute.xlu0 0
        %346 = vperm.xlu0 %345, %v316
        %v347 = vpop.permute.xlu0 %346
        %349 = vset.pattern.permute.xlu0 0
        %350 = vperm.xlu0 %349, %v320
        %v351 = vpop.permute.xlu0 %350
        %353 = vset.pattern.permute.xlu0 0
        %354 = vperm.xlu0 %353, %v324
        %v355 = vpop.permute.xlu0 %354
        %357 = vset.pattern.permute.xlu0 0
        %358 = vperm.xlu0 %357, %v328
        %v359 = vpop.permute.xlu0 %358
        %361 = vset.pattern.permute.xlu0 0
        %362 = vperm.xlu0 %361, %v332
        %v363 = vpop.permute.xlu0 %362
        %365 = vset.pattern.permute.xlu0 0
        %366 = vperm.xlu0 %365, %v336
        %v367 = vpop.permute.xlu0 %366
        %v369 = vadd.f32 %v339, %v281
        %v370 = vadd.f32 %v339, %v282
        %v371 = vadd.f32 %v343, %v283
        %v372 = vadd.f32 %v343, %v284
        %v373 = vadd.f32 %v347, %v285
        %v374 = vadd.f32 %v347, %v286
        %v375 = vadd.f32 %v351, %v287
        %v376 = vadd.f32 %v351, %v288
        %v377 = vadd.f32 %v355, %v289
        %v378 = vadd.f32 %v355, %v290
        %v379 = vadd.f32 %v359, %v291
        %v380 = vadd.f32 %v359, %v292
        %v381 = vadd.f32 %v363, %v293
        %v382 = vadd.f32 %v363, %v294
        %v383 = vadd.f32 %v367, %v295
        %v384 = vadd.f32 %v367, %v296
        %s385 = scalar_lea.vmem %s1, 8
        %v386 = vld [vmem:[%s385] sm:$0x1]
        %v387 = vld [vmem:[%s385 + $0x1] sm:$0x1]
        %v388 = vld [vmem:[%s385 + $0x2] sm:$0x1]
        %v389 = vld [vmem:[%s385 + $0x3] sm:$0x1]
        %v390 = vld [vmem:[%s385 + $0x4] sm:$0x1]
        %v391 = vld [vmem:[%s385 + $0x5] sm:$0x1]
        %v392 = vld [vmem:[%s385 + $0x6] sm:$0x1]
        %v393 = vld [vmem:[%s385 + $0x7] sm:$0x1]
        %s394 = scalar_lea.vmem %s163, 16 [#allocation2]
        %v395 = vld [vmem:[%s394] sm:$0xff]
        %v396 = vld [vmem:[%s394 + $0x8] sm:$0xff]
        %v405 = vlaneseq
        %v406 = vshrl.u32 %v405, 7
        %v407 = vsub.s32 0, %v406
        %v408 = vrot.slane %v386, %v407
        %v409 = vlaneseq
        %v410 = vshrl.u32 %v409, 7
        %v411 = vsub.s32 0, %v410
        %v412 = vrot.slane %v387, %v411
        %v413 = vlaneseq
        %v414 = vshrl.u32 %v413, 7
        %v415 = vsub.s32 0, %v414
        %v416 = vrot.slane %v388, %v415
        %v417 = vlaneseq
        %v418 = vshrl.u32 %v417, 7
        %v419 = vsub.s32 0, %v418
        %v420 = vrot.slane %v389, %v419
        %v421 = vlaneseq
        %v422 = vshrl.u32 %v421, 7
        %v423 = vsub.s32 0, %v422
        %v424 = vrot.slane %v390, %v423
        %v425 = vlaneseq
        %v426 = vshrl.u32 %v425, 7
        %v427 = vsub.s32 0, %v426
        %v428 = vrot.slane %v391, %v427
        %v429 = vlaneseq
        %v430 = vshrl.u32 %v429, 7
        %v431 = vsub.s32 0, %v430
        %v432 = vrot.slane %v392, %v431
        %v433 = vlaneseq
        %v434 = vshrl.u32 %v433, 7
        %v435 = vsub.s32 0, %v434
        %v436 = vrot.slane %v393, %v435
        %437 = vset.pattern.permute.xlu0 0
        %438 = vperm.xlu0 %437, %v408
        %v439 = vpop.permute.xlu0 %438
        %441 = vset.pattern.permute.xlu0 0
        %442 = vperm.xlu0 %441, %v412
        %v443 = vpop.permute.xlu0 %442
        %445 = vset.pattern.permute.xlu0 0
        %446 = vperm.xlu0 %445, %v416
        %v447 = vpop.permute.xlu0 %446
        %449 = vset.pattern.permute.xlu0 0
        %450 = vperm.xlu0 %449, %v420
        %v451 = vpop.permute.xlu0 %450
        %453 = vset.pattern.permute.xlu0 0
        %454 = vperm.xlu0 %453, %v424
        %v455 = vpop.permute.xlu0 %454
        %457 = vset.pattern.permute.xlu0 0
        %458 = vperm.xlu0 %457, %v428
        %v459 = vpop.permute.xlu0 %458
        %461 = vset.pattern.permute.xlu0 0
        %462 = vperm.xlu0 %461, %v432
        %v463 = vpop.permute.xlu0 %462
        %465 = vset.pattern.permute.xlu0 0
        %466 = vperm.xlu0 %465, %v436
        %v467 = vpop.permute.xlu0 %466
        %v469 = vmul.f32 %v439, %v395
        %v470 = vmul.f32 %v439, %v396
        %v471 = vmul.f32 %v443, %v395
        %v472 = vmul.f32 %v443, %v396
        %v473 = vmul.f32 %v447, %v395
        %v474 = vmul.f32 %v447, %v396
        %v475 = vmul.f32 %v451, %v395
        %v476 = vmul.f32 %v451, %v396
        %v477 = vmul.f32 %v455, %v395
        %v478 = vmul.f32 %v455, %v396
        %v479 = vmul.f32 %v459, %v395
        %v480 = vmul.f32 %v459, %v396
        %v481 = vmul.f32 %v463, %v395
        %v482 = vmul.f32 %v463, %v396
        %v483 = vmul.f32 %v467, %v395
        %v484 = vmul.f32 %v467, %v396
        %v485 = vadd.f32 %v369, %v469
        %v486 = vadd.f32 %v370, %v470
        %v487 = vadd.f32 %v371, %v471
        %v488 = vadd.f32 %v372, %v472
        %v489 = vadd.f32 %v373, %v473
        %v490 = vadd.f32 %v374, %v474
        %v491 = vadd.f32 %v375, %v475
        %v492 = vadd.f32 %v376, %v476
        %v493 = vadd.f32 %v377, %v477
        %v494 = vadd.f32 %v378, %v478
        %v495 = vadd.f32 %v379, %v479
        %v496 = vadd.f32 %v380, %v480
        %v497 = vadd.f32 %v381, %v481
        %v498 = vadd.f32 %v382, %v482
        %v499 = vadd.f32 %v383, %v483
        %v500 = vadd.f32 %v384, %v484
        %s501 = scalar_lea.vmem %s1, 16
        %v502 = vld [vmem:[%s501] sm:$0x1]
        %v503 = vld [vmem:[%s501 + $0x1] sm:$0x1]
        %v504 = vld [vmem:[%s501 + $0x2] sm:$0x1]
        %v505 = vld [vmem:[%s501 + $0x3] sm:$0x1]
        %v506 = vld [vmem:[%s501 + $0x4] sm:$0x1]
        %v507 = vld [vmem:[%s501 + $0x5] sm:$0x1]
        %v508 = vld [vmem:[%s501 + $0x6] sm:$0x1]
        %v509 = vld [vmem:[%s501 + $0x7] sm:$0x1]
        %s510 = scalar_lea.vmem %s163, 32 [#allocation2]
        %v511 = vld [vmem:[%s510] sm:$0xff]
        %v512 = vld [vmem:[%s510 + $0x8] sm:$0xff]
        %v521 = vlaneseq
        %v522 = vshrl.u32 %v521, 7
        %v523 = vsub.s32 0, %v522
        %v524 = vrot.slane %v502, %v523
        %v525 = vlaneseq
        %v526 = vshrl.u32 %v525, 7
        %v527 = vsub.s32 0, %v526
        %v528 = vrot.slane %v503, %v527
        %v529 = vlaneseq
        %v530 = vshrl.u32 %v529, 7
        %v531 = vsub.s32 0, %v530
        %v532 = vrot.slane %v504, %v531
        %v533 = vlaneseq
        %v534 = vshrl.u32 %v533, 7
        %v535 = vsub.s32 0, %v534
        %v536 = vrot.slane %v505, %v535
        %v537 = vlaneseq
        %v538 = vshrl.u32 %v537, 7
        %v539 = vsub.s32 0, %v538
        %v540 = vrot.slane %v506, %v539
        %v541 = vlaneseq
        %v542 = vshrl.u32 %v541, 7
        %v543 = vsub.s32 0, %v542
        %v544 = vrot.slane %v507, %v543
        %v545 = vlaneseq
        %v546 = vshrl.u32 %v545, 7
        %v547 = vsub.s32 0, %v546
        %v548 = vrot.slane %v508, %v547
        %v549 = vlaneseq
        %v550 = vshrl.u32 %v549, 7
        %v551 = vsub.s32 0, %v550
        %v552 = vrot.slane %v509, %v551
        %553 = vset.pattern.permute.xlu0 0
        %554 = vperm.xlu0 %553, %v524
        %v555 = vpop.permute.xlu0 %554
        %557 = vset.pattern.permute.xlu0 0
        %558 = vperm.xlu0 %557, %v528
        %v559 = vpop.permute.xlu0 %558
        %561 = vset.pattern.permute.xlu0 0
        %562 = vperm.xlu0 %561, %v532
        %v563 = vpop.permute.xlu0 %562
        %565 = vset.pattern.permute.xlu0 0
        %566 = vperm.xlu0 %565, %v536
        %v567 = vpop.permute.xlu0 %566
        %569 = vset.pattern.permute.xlu0 0
        %570 = vperm.xlu0 %569, %v540
        %v571 = vpop.permute.xlu0 %570
        %573 = vset.pattern.permute.xlu0 0
        %574 = vperm.xlu0 %573, %v544
        %v575 = vpop.permute.xlu0 %574
        %577 = vset.pattern.permute.xlu0 0
        %578 = vperm.xlu0 %577, %v548
        %v579 = vpop.permute.xlu0 %578
        %581 = vset.pattern.permute.xlu0 0
        %582 = vperm.xlu0 %581, %v552
        %v583 = vpop.permute.xlu0 %582
        %v585 = vmul.f32 %v555, %v511
        %v586 = vmul.f32 %v555, %v512
        %v587 = vmul.f32 %v559, %v511
        %v588 = vmul.f32 %v559, %v512
        %v589 = vmul.f32 %v563, %v511
        %v590 = vmul.f32 %v563, %v512
        %v591 = vmul.f32 %v567, %v511
        %v592 = vmul.f32 %v567, %v512
        %v593 = vmul.f32 %v571, %v511
        %v594 = vmul.f32 %v571, %v512
        %v595 = vmul.f32 %v575, %v511
        %v596 = vmul.f32 %v575, %v512
        %v597 = vmul.f32 %v579, %v511
        %v598 = vmul.f32 %v579, %v512
        %v599 = vmul.f32 %v583, %v511
        %v600 = vmul.f32 %v583, %v512
        %v601 = vadd.f32 %v485, %v585
        %v602 = vadd.f32 %v486, %v586
        %v603 = vadd.f32 %v487, %v587
        %v604 = vadd.f32 %v488, %v588
        %v605 = vadd.f32 %v489, %v589
        %v606 = vadd.f32 %v490, %v590
        %v607 = vadd.f32 %v491, %v591
        %v608 = vadd.f32 %v492, %v592
        %v609 = vadd.f32 %v493, %v593
        %v610 = vadd.f32 %v494, %v594
        %v611 = vadd.f32 %v495, %v595
        %v612 = vadd.f32 %v496, %v596
        %v613 = vadd.f32 %v497, %v597
        %v614 = vadd.f32 %v498, %v598
        %v615 = vadd.f32 %v499, %v599
        %v616 = vadd.f32 %v500, %v600
        %vm617 = vcmask 146432
        %618 = vst.msk [vmem:[%s190] sm:$0xff] %vm617, %v339
        %619 = vst.msk [vmem:[%s190 + $0x8] sm:$0xff] %vm617, %v339
        %vm620 = vcmask 140288
        %621 = vst.msk [vmem:[%s190 + $0x10] sm:$0x3] %vm620, %v339
        %622 = vst.msk [vmem:[%s190 + $0x18] sm:$0xff] %vm617, %v343
        %623 = vst.msk [vmem:[%s190 + $0x20] sm:$0xff] %vm617, %v343
        %624 = vst.msk [vmem:[%s190 + $0x28] sm:$0x3] %vm620, %v343
        %625 = vst.msk [vmem:[%s190 + $0x30] sm:$0xff] %vm617, %v347
        %626 = vst.msk [vmem:[%s190 + $0x38] sm:$0xff] %vm617, %v347
        %627 = vst.msk [vmem:[%s190 + $0x40] sm:$0x3] %vm620, %v347
        %628 = vst.msk [vmem:[%s190 + $0x48] sm:$0xff] %vm617, %v351
        %629 = vst.msk [vmem:[%s190 + $0x50] sm:$0xff] %vm617, %v351
        %630 = vst.msk [vmem:[%s190 + $0x58] sm:$0x3] %vm620, %v351
        %631 = vst.msk [vmem:[%s190 + $0x60] sm:$0xff] %vm617, %v355
        %632 = vst.msk [vmem:[%s190 + $0x68] sm:$0xff] %vm617, %v355
        %633 = vst.msk [vmem:[%s190 + $0x70] sm:$0x3] %vm620, %v355
        %634 = vst.msk [vmem:[%s190 + $0x78] sm:$0xff] %vm617, %v359
        %635 = vst.msk [vmem:[%s190 + $0x80] sm:$0xff] %vm617, %v359
        %636 = vst.msk [vmem:[%s190 + $0x88] sm:$0x3] %vm620, %v359
        %637 = vst.msk [vmem:[%s190 + $0x90] sm:$0xff] %vm617, %v363
        %638 = vst.msk [vmem:[%s190 + $0x98] sm:$0xff] %vm617, %v363
        %639 = vst.msk [vmem:[%s190 + $0xa0] sm:$0x3] %vm620, %v363
        %640 = vst.msk [vmem:[%s190 + $0xa8] sm:$0xff] %vm617, %v367
        %641 = vst.msk [vmem:[%s190 + $0xb0] sm:$0xff] %vm617, %v367
        %642 = vst.msk [vmem:[%s190 + $0xb8] sm:$0x3] %vm620, %v367
        %659 = vrot.lane.b32.xlu0 %v601, 1
        %v660 = vpop.permute.xlu0 %659
        %661 = vrot.lane.b32.xlu0 %v602, 1
        %v662 = vpop.permute.xlu0 %661
        %663 = vrot.lane.b32.xlu0 %v603, 1
        %v664 = vpop.permute.xlu0 %663
        %665 = vrot.lane.b32.xlu0 %v604, 1
        %v666 = vpop.permute.xlu0 %665
        %667 = vrot.lane.b32.xlu0 %v605, 1
        %v668 = vpop.permute.xlu0 %667
        %669 = vrot.lane.b32.xlu0 %v606, 1
        %v670 = vpop.permute.xlu0 %669
        %671 = vrot.lane.b32.xlu0 %v607, 1
        %v672 = vpop.permute.xlu0 %671
        %673 = vrot.lane.b32.xlu0 %v608, 1
        %v674 = vpop.permute.xlu0 %673
        %675 = vrot.lane.b32.xlu0 %v609, 1
        %v676 = vpop.permute.xlu0 %675
        %677 = vrot.lane.b32.xlu0 %v610, 1
        %v678 = vpop.permute.xlu0 %677
        %679 = vrot.lane.b32.xlu0 %v611, 1
        %v680 = vpop.permute.xlu0 %679
        %681 = vrot.lane.b32.xlu0 %v612, 1
        %v682 = vpop.permute.xlu0 %681
        %683 = vrot.lane.b32.xlu0 %v613, 1
        %v684 = vpop.permute.xlu0 %683
        %685 = vrot.lane.b32.xlu0 %v614, 1
        %v686 = vpop.permute.xlu0 %685
        %687 = vrot.lane.b32.xlu0 %v615, 1
        %v688 = vpop.permute.xlu0 %687
        %689 = vrot.lane.b32.xlu0 %v616, 1
        %v690 = vpop.permute.xlu0 %689
        %vm707 = vcmask 138248
        %708 = vst.msk [vmem:[%s190 + $0x1] sm:$0xff] %vm707, %v660
        %709 = vst.msk [vmem:[%s190 + $0x9] sm:$0xff] %vm707, %v662
        %710 = vst.msk [vmem:[%s190 + $0x19] sm:$0xff] %vm707, %v664
        %711 = vst.msk [vmem:[%s190 + $0x21] sm:$0xff] %vm707, %v666
        %712 = vst.msk [vmem:[%s190 + $0x31] sm:$0xff] %vm707, %v668
        %713 = vst.msk [vmem:[%s190 + $0x39] sm:$0xff] %vm707, %v670
        %714 = vst.msk [vmem:[%s190 + $0x49] sm:$0xff] %vm707, %v672
        %715 = vst.msk [vmem:[%s190 + $0x51] sm:$0xff] %vm707, %v674
        %716 = vst.msk [vmem:[%s190 + $0x61] sm:$0xff] %vm707, %v676
        %717 = vst.msk [vmem:[%s190 + $0x69] sm:$0xff] %vm707, %v678
        %718 = vst.msk [vmem:[%s190 + $0x79] sm:$0xff] %vm707, %v680
        %719 = vst.msk [vmem:[%s190 + $0x81] sm:$0xff] %vm707, %v682
        %720 = vst.msk [vmem:[%s190 + $0x91] sm:$0xff] %vm707, %v684
        %721 = vst.msk [vmem:[%s190 + $0x99] sm:$0xff] %vm707, %v686
        %722 = vst.msk [vmem:[%s190 + $0xa9] sm:$0xff] %vm707, %v688
        %723 = vst.msk [vmem:[%s190 + $0xb1] sm:$0xff] %vm707, %v690
        %p724 = scmp.lt.s32.totalorder %s17, 1
        %s725 = scalar_select %p724, %s17, 1
        %s726 = smul.addr %s725, 24
        %s727 = smul.addr %s726, 8
        %s728 = scalar_lea.vmem %s3, %s727
        // Predicated region
        $region37: #{tpu_custom_call.1} parent=31 // pred_check
          %p729 = pneg %p103
        $region38: #{tpu_custom_call.1} parent=31 // pred_check_branch
          %731 = sbr.rel (%p729) target = $region40
        $region39: #{tpu_custom_call.1} parent=31 // pred_region
          _
        $region40: #{tpu_custom_call.1} parent=31 // pred_fallthru
          _
      $region32: #{tpu_custom_call.1} parent=5 // pred_fallthru
        _
      %p732 = scmp.le.s32.totalorder 2, %s12
      // Predicated region
      $region41: #{tpu_custom_call.1} parent=5 // pred_check
        %p733 = pneg %p732
      $region42: #{tpu_custom_call.1} parent=5 // pred_check_branch
        %735 = sbr.rel (%p733) target = $region44
      $region43: #{tpu_custom_call.1} parent=5 // pred_region
        %s736 = ssub.s32 %s12, 2
        // Predicated region
        $region45: #{tpu_custom_call.1} parent=43 // pred_check
          %p737 = pneg %p109
        $region46: #{tpu_custom_call.1} parent=43 // pred_check_branch
          %739 = sbr.rel (%p737) target = $region48
        $region47: #{tpu_custom_call.1} parent=43 // pred_region
          %p740 = scmp.lt.s32.totalorder %s18, 1
          %s741 = scalar_select %p740, %s18, 1
          %s742 = smul.addr %s741, 24
          %s743 = smul.addr %s742, 8
          %s744 = scalar_lea.vmem %s3, %s743
        $region48: #{tpu_custom_call.1} parent=43 // pred_fallthru
          _
      $region44: #{tpu_custom_call.1} parent=5 // pred_fallthru
        _
    $region6: #{tpu_custom_call.1} parent=1 // loop_footer
      %s16 = sadd.s32 1, %s12
    $region7: #{tpu_custom_call.1} parent=1 // loop_footer_branch
      %11 = sbr.rel target = $region3
    $region8: #{tpu_custom_call.1} parent=1 // loop_exit
      _
    %745 = vsyncpa [#allocation3], 1
    %s746 = scalar_lea.sflag [#allocation3], 1
    %747 = vsyncpa %s746, 1

</llo_original>
